<compile_context>
chip_gen: v7x
topology: tpu7x:2x2x1
jax: 0.10.0
libtpu: 0.0.40
codegen_flags: <defaults>
</compile_context>

<pallas_src>
import math
from functools import partial

import jax
import jax.numpy as jnp
from jax import lax
from jax.experimental import pallas as pl
from jax.experimental.pallas import tpu as pltpu


def _choose_tile(n, cap=512):
    """Largest row tile <= cap that divides n (multiple of 8 when actually tiling)."""
    if n <= cap:
        return n
    for t in range(cap - cap % 8, 7, -8):
        if n % t == 0:
            return t
    return n  # fall back: untiled


# ----------------------------------------------------------------------------
# Row-tiled linear kernel (value projection, output projection).
# ----------------------------------------------------------------------------
def _linear_kernel(x_ref, w_ref, b_ref, o_ref):
    o_ref[...] = (jnp.dot(x_ref[...], w_ref[...],
                          preferred_element_type=jnp.float32) + b_ref[...])


def linear(x, w, b, *, block_rows=512):
    # x: (M, K), w: (K, N), b: (N,)
    Mr, K = x.shape
    N = w.shape[1]
    tm = _choose_tile(Mr, block_rows)
    grid = (Mr // tm,)
    block_bytes = 4 * (tm * K + K * N + N + tm * N)
    vmem_limit = int(max(4 * block_bytes, 16 * 2**20))
    return pl.pallas_call(
        _linear_kernel,
        grid=grid,
        in_specs=[pl.BlockSpec((tm, K), lambda i: (i, 0)),
                  pl.BlockSpec((K, N), lambda i: (0, 0)),
                  pl.BlockSpec((1, N), lambda i: (0, 0))],
        out_specs=pl.BlockSpec((tm, N), lambda i: (i, 0)),
        out_shape=jax.ShapeDtypeStruct((Mr, N), jnp.float32),
        compiler_params=pltpu.CompilerParams(
            dimension_semantics=("parallel",),
            vmem_limit_bytes=vmem_limit),
    )(x, w, b.reshape(1, N))


# ----------------------------------------------------------------------------
# Fused projection kernel: one HBM pass over the activations produces the
# content projection, the omega projection (ReLU) and the theta projection
# (tanh * pi) for one input stream (queries or keys).
# ----------------------------------------------------------------------------
def _fused_proj_kernel(x_ref, wm_ref, bm_ref, wo_ref, bo_ref, wt_ref, bt_ref,
                       main_ref, om_ref, th_ref):
    x = x_ref[...]
    main_ref[...] = (jnp.dot(x, wm_ref[...],
                             preferred_element_type=jnp.float32) + bm_ref[...])
    om = jnp.dot(x, wo_ref[...], preferred_element_type=jnp.float32) + bo_ref[...]
    om_ref[...] = jnp.maximum(om, 0.0)
    th = jnp.dot(x, wt_ref[...], preferred_element_type=jnp.float32) + bt_ref[...]
    th_ref[...] = jnp.tanh(th) * math.pi


def fused_projection(x, w_main, b_main, w_om, b_om, w_th, b_th, *, block_rows=512):
    Mr, K = x.shape
    N0 = w_main.shape[1]
    N1 = w_om.shape[1]
    tm = _choose_tile(Mr, block_rows)
    grid = (Mr // tm,)
    block_bytes = 4 * (tm * K + K * (N0 + 2 * N1) + (N0 + 2 * N1)
                       + tm * (N0 + 2 * N1))
    vmem_limit = int(max(4 * block_bytes, 16 * 2**20))
    return pl.pallas_call(
        _fused_proj_kernel,
        grid=grid,
        in_specs=[pl.BlockSpec((tm, K), lambda i: (i, 0)),
                  pl.BlockSpec((K, N0), lambda i: (0, 0)),
                  pl.BlockSpec((1, N0), lambda i: (0, 0)),
                  pl.BlockSpec((K, N1), lambda i: (0, 0)),
                  pl.BlockSpec((1, N1), lambda i: (0, 0)),
                  pl.BlockSpec((K, N1), lambda i: (0, 0)),
                  pl.BlockSpec((1, N1), lambda i: (0, 0))],
        out_specs=(pl.BlockSpec((tm, N0), lambda i: (i, 0)),
                   pl.BlockSpec((tm, N1), lambda i: (i, 0)),
                   pl.BlockSpec((tm, N1), lambda i: (i, 0))),
        out_shape=(jax.ShapeDtypeStruct((Mr, N0), jnp.float32),
                   jax.ShapeDtypeStruct((Mr, N1), jnp.float32),
                   jax.ShapeDtypeStruct((Mr, N1), jnp.float32)),
        compiler_params=pltpu.CompilerParams(
            dimension_semantics=("parallel",),
            vmem_limit_bytes=vmem_limit),
    )(x, w_main, b_main.reshape(1, N0),
      w_om, b_om.reshape(1, N1), w_th, b_th.reshape(1, N1))


# ----------------------------------------------------------------------------
# Learning-to-Rotate attention kernel.
# Grid = (B, num_q_tiles); each program handles all H heads of one query tile.
# Inputs: q/k/v in head-major interleaved layout, plus compact per-period
# phases (B, H, L|S, M).  Rotation, phase expansion and the even/odd pairing
# are all done in-kernel; scores use ONE E-wide MXU contraction.
# ----------------------------------------------------------------------------
def _lra_attention_kernel(q_ref, k_ref, v_ref, qp_ref, kp_ref, *out_refs,
                          scale, out_attn, use_bf16):
    out_ref = out_refs[0]
    H, Tq, E = q_ref.shape
    S = k_ref.shape[1]
    M = qp_ref.shape[-1]
    R = E // M  # interleaved components per period (= 2 * pairs-per-period)

    # --- constant matrices built from iotas (no extra inputs) -------------
    # expand: (M, E) 0/1 matrix broadcasting a per-period value over its lanes.
    lane = lax.broadcasted_iota(jnp.int32, (M, E), 1)
    per = lax.broadcasted_iota(jnp.int32, (M, E), 0)
    expand = (lane // R == per).astype(jnp.float32)
    # swap: (E, E) signed pair-swap:  (x @ swap)[2i] = -x[2i+1], [2i+1] = +x[2i]
    row = lax.broadcasted_iota(jnp.int32, (E, E), 0)
    col = lax.broadcasted_iota(jnp.int32, (E, E), 1)
    swap = jnp.where((row % 2 == 0) & (col == row + 1), 1.0,
                     jnp.where((row % 2 == 1) & (col == row - 1), -1.0, 0.0))

    def mm(x3, w2):  # (H, X, K) @ (K, N) -> (H, X, N)  (rank-2 MXU matmul)
        h, xx, kk = x3.shape
        y = jnp.dot(x3.reshape(h * xx, kk), w2,
                    preferred_element_type=jnp.float32)
        return y.reshape(h, xx, w2.shape[1])

    # --- trig on the compact phases, then expand to E lanes ----------------
    qp = qp_ref[...]                      # (H, Tq, M)
    kp = kp_ref[...]                      # (H, S,  M)
    cq = mm(jnp.cos(qp), expand)
    sq = mm(jnp.sin(qp), expand)
    ck = mm(jnp.cos(kp), expand)
    sk = mm(jnp.sin(kp), expand)

    # --- rotate (even, odd) pairs in the interleaved layout (f32) ----------
    q = q_ref[...]
    k = k_ref[...]
    qrot = q * cq + mm(q, swap) * sq      # (H, Tq, E)
    krot = k * ck + mm(k, swap) * sk      # (H, S,  E)

    if use_bf16:
        qrot = qrot.astype(jnp.bfloat16)
        krot = krot.astype(jnp.bfloat16)

    # --- single E-wide score contraction + softmax --------------------------
    scores = jnp.einsum('hqe,hke->hqk', qrot, krot,
                        preferred_element_type=jnp.float32) * scale
    scores = scores - jnp.max(scores, axis=-1, keepdims=True)
    p = jnp.exp(scores)
    denom = jnp.sum(p, axis=-1, keepdims=True)
    attn = p * pl.reciprocal(denom, approx=True)

    if out_attn:
        out_refs[1][...] = attn

    v = v_ref[...]
    if use_bf16:
        attn_mm = attn.astype(jnp.bfloat16)
        v = v.astype(jnp.bfloat16)
    else:
        attn_mm = attn
    out_ref[...] = jnp.einsum('hqk,hke->hqe', attn_mm, v,
                              preferred_element_type=jnp.float32)


def lra_attention(q, k, v, q_omegas, q_thetas, k_omegas, k_thetas,
                  *, output_attention=True, use_bf16=True, q_block=512):
    # q: (B, L, H, E); k: (B, S, H, E); v: (B, S, H, Ev);
    # omegas/thetas: (B, L|S, H, M)
    B, L, H, E = q.shape
    S = k.shape[1]
    Ev = v.shape[-1]
    M = q_omegas.shape[-1]
    assert E % (2 * M) == 0, "head dim must hold an even number of pairs per period"
    scale = 1.0 / math.sqrt(E)

    # head-major layouts (glue transposes in XLA)
    qh = jnp.transpose(q, (0, 2, 1, 3))       # (B, H, L, E)
    kh = jnp.transpose(k, (0, 2, 1, 3))       # (B, H, S, E)
    vh = jnp.transpose(v, (0, 2, 1, 3))       # (B, H, S, Ev)

    # compact phases: omega * t + theta  (tiny elementwise glue op)
    pos_q = jnp.arange(L, dtype=jnp.float32)[None, :, None, None]
    pos_k = jnp.arange(S, dtype=jnp.float32)[None, :, None, None]
    q_phase = jnp.transpose(q_omegas * pos_q + q_thetas, (0, 2, 1, 3))  # (B,H,L,M)
    k_phase = jnp.transpose(k_omegas * pos_k + k_thetas, (0, 2, 1, 3))  # (B,H,S,M)

    tq = _choose_tile(L, q_block)
    grid = (B, L // tq)

    spec_q = pl.BlockSpec((None, H, tq, E), lambda b, i: (b, 0, i, 0))
    spec_k = pl.BlockSpec((None, H, S, E), lambda b, i: (b, 0, 0, 0))
    spec_v = pl.BlockSpec((None, H, S, Ev), lambda b, i: (b, 0, 0, 0))
    spec_qp = pl.BlockSpec((None, H, tq, M), lambda b, i: (b, 0, i, 0))
    spec_kp = pl.BlockSpec((None, H, S, M), lambda b, i: (b, 0, 0, 0))
    spec_o = pl.BlockSpec((None, H, tq, Ev), lambda b, i: (b, 0, i, 0))
    spec_a = pl.BlockSpec((None, H, tq, S), lambda b, i: (b, 0, i, 0))

    out_specs = [spec_o]
    out_shapes = [jax.ShapeDtypeStruct((B, H, L, Ev), jnp.float32)]
    if output_attention:
        out_specs.append(spec_a)
        out_shapes.append(jax.ShapeDtypeStruct((B, H, L, S), jnp.float32))

    block_bytes = 4 * (H * tq * E + H * S * E + H * S * Ev
                       + H * tq * M + H * S * M + H * tq * Ev
                       + (H * tq * S if output_attention else 0))
    vmem_limit = int(max(4 * block_bytes, 16 * 2**20))

    results = pl.pallas_call(
        partial(_lra_attention_kernel, scale=scale,
                out_attn=output_attention, use_bf16=use_bf16),
        grid=grid,
        in_specs=[spec_q, spec_k, spec_v, spec_qp, spec_kp],
        out_specs=tuple(out_specs),
        out_shape=tuple(out_shapes),
        compiler_params=pltpu.CompilerParams(
            dimension_semantics=("parallel", "parallel"),
            vmem_limit_bytes=vmem_limit),
    )(qh, kh, vh, q_phase, k_phase)

    if output_attention:
        out, attn = results
    else:
        (out,) = results
        attn = None

    out = jnp.transpose(out, (0, 2, 1, 3))    # (B, L, H, Ev)
    return out, attn


# ----------------------------------------------------------------------------
# Penalty reductions kernel (first-order-difference D-matrix == finite diff).
# Grid over B with SMEM scalar accumulators.
# ----------------------------------------------------------------------------
def _penalty_kernel(qw_ref, kw_ref, qt_ref, kt_ref, om_ref, th_ref):
    @pl.when(pl.program_id(0) == 0)
    def _():
        om_ref[0, 0] = 0.0
        th_ref[0, 0] = 0.0

    qw = qw_ref[...]
    kw = kw_ref[...]
    qd = qw[1:, :] - qw[:-1, :]
    kd = kw[1:, :] - kw[:-1, :]
    om_ref[0, 0] += jnp.sum(qd * qd) + jnp.sum(kd * kd)
    qt = qt_ref[...]
    kt = kt_ref[...]
    th_ref[0, 0] += jnp.sum(qt * qt) + jnp.sum(kt * kt)


def penalties(q_omegas, k_omegas, q_thetas, k_thetas):
    B, L, H, M = q_omegas.shape
    S = k_omegas.shape[1]
    HM = H * M
    qw = q_omegas.reshape(B, L, HM)
    kw = k_omegas.reshape(B, S, HM)
    qt = q_thetas.reshape(B, L, HM)
    kt = k_thetas.reshape(B, S, HM)
    smem_out = pl.BlockSpec((1, 1), lambda b: (0, 0),
                            memory_space=pltpu.MemorySpace.SMEM)
    om, th = pl.pallas_call(
        _penalty_kernel,
        grid=(B,),
        in_specs=[pl.BlockSpec((None, L, HM), lambda b: (b, 0, 0)),
                  pl.BlockSpec((None, S, HM), lambda b: (b, 0, 0)),
                  pl.BlockSpec((None, L, HM), lambda b: (b, 0, 0)),
                  pl.BlockSpec((None, S, HM), lambda b: (b, 0, 0))],
        out_specs=(smem_out, smem_out),
        out_shape=(jax.ShapeDtypeStruct((1, 1), jnp.float32),
                   jax.ShapeDtypeStruct((1, 1), jnp.float32)),
        compiler_params=pltpu.CompilerParams(
            dimension_semantics=("arbitrary",)),
    )(qw, kw, qt, kt)
    return om[0, 0], th[0, 0]


# ----------------------------------------------------------------------------
# The layer (parameter container + forward orchestration).
# ----------------------------------------------------------------------------
class LearningToRotateAttentionLayerPallas:
    def __init__(self, key, query_size, key_size, d_model, n_heads,
                 period_type="variant", n_periods=2, d_keys=None, d_values=None,
                 output_attention=True, use_bf16_mxu=True):
        assert period_type == "variant"  # TODO(synk): 'invariant' branch not implemented
        d_keys = d_keys or d_model // n_heads
        d_values = d_values or d_model // n_heads
        self.n_heads = n_heads
        self.n_periods = n_periods
        self.d_keys = d_keys
        self.d_values = d_values
        self.query_size = query_size
        self.key_size = key_size
        self.output_attention = output_attention
        self.use_bf16_mxu = use_bf16_mxu

        def uni(k, shape, fan_in):
            bound = 1.0 / math.sqrt(fan_in)
            return jax.random.uniform(k, shape, jnp.float32, -bound, bound)

        ks = jax.random.split(key, 16)
        dp = n_periods * n_heads
        # Linear / Conv1d(k=1) weights stored as (in, out): forward is x @ W + b.
        self.q_w = uni(ks[0], (d_model, d_keys * n_heads), d_model)
        self.q_b = uni(ks[1], (d_keys * n_heads,), d_model)
        self.k_w = uni(ks[2], (d_model, d_keys * n_heads), d_model)
        self.k_b = uni(ks[3], (d_keys * n_heads,), d_model)
        self.v_w = uni(ks[4], (d_model, d_values * n_heads), d_model)
        self.v_b = uni(ks[5], (d_values * n_heads,), d_model)
        self.q_omega_w = uni(ks[6], (d_model, dp), d_model)
        self.q_omega_b = uni(ks[7], (dp,), d_model)
        self.k_omega_w = uni(ks[8], (d_model, dp), d_model)
        self.k_omega_b = uni(ks[9], (dp,), d_model)
        self.q_theta_w = uni(ks[10], (d_model, dp), d_model)
        self.q_theta_b = uni(ks[11], (dp,), d_model)
        self.k_theta_w = uni(ks[12], (d_model, dp), d_model)
        self.k_theta_b = uni(ks[13], (dp,), d_model)
        self.out_w = uni(ks[14], (d_values * n_heads, d_model), d_values * n_heads)
        self.out_b = uni(ks[15], (d_model,), d_values * n_heads)

    def __call__(self, queries, keys, values, attn_mask=None, is_training=False):
        # TODO(synk): attn_mask and attention dropout are not applied.
        B, L, D = queries.shape
        S = keys.shape[1]
        H, M = self.n_heads, self.n_periods
        dk, dv = self.d_keys, self.d_values

        xq = queries.reshape(B * L, D)
        xk = keys.reshape(B * S, D)
        xv = values.reshape(B * S, D)

        # Fused projections: one HBM pass over queries / keys each.
        q_flat, q_om_flat, q_th_flat = fused_projection(
            xq, self.q_w, self.q_b, self.q_omega_w, self.q_omega_b,
            self.q_theta_w, self.q_theta_b)
        k_flat, k_om_flat, k_th_flat = fused_projection(
            xk, self.k_w, self.k_b, self.k_omega_w, self.k_omega_b,
            self.k_theta_w, self.k_theta_b)
        v_flat = linear(xv, self.v_w, self.v_b)

        q = q_flat.reshape(B, L, H, dk)
        k = k_flat.reshape(B, S, H, dk)
        v = v_flat.reshape(B, S, H, dv)
        q_omegas = q_om_flat.reshape(B, L, H, M)
        k_omegas = k_om_flat.reshape(B, S, H, M)
        q_thetas = q_th_flat.reshape(B, L, H, M)
        k_thetas = k_th_flat.reshape(B, S, H, M)

        out, attn = lra_attention(
            q, k, v, q_omegas, q_thetas, k_omegas, k_thetas,
            output_attention=self.output_attention,
            use_bf16=self.use_bf16_mxu)

        out = linear(out.reshape(B * L, H * dv), self.out_w, self.out_b)
        out = out.reshape(B, L, D)

        omega_pen, theta_pen = penalties(q_omegas, k_omegas, q_thetas, k_thetas)
        return out, attn, omega_pen, theta_pen


# ----------------------------------------------------------------------------
# Pure-JAX reference for verification.
# ----------------------------------------------------------------------------
def reference_forward(layer, queries, keys, values):
    hp = jax.lax.Precision.HIGHEST

    def lin(x, w, b):
        return jnp.dot(x, w, precision=hp) + b

    B, L, _ = queries.shape
    S = keys.shape[1]
    H, M = layer.n_heads, layer.n_periods

    q_omegas = jax.nn.relu(lin(queries, layer.q_omega_w, layer.q_omega_b)).reshape(B, L, H, M)
    k_omegas = jax.nn.relu(lin(keys, layer.k_omega_w, layer.k_omega_b)).reshape(B, S, H, M)
    q_thetas = (jnp.tanh(lin(queries, layer.q_theta_w, layer.q_theta_b)) * math.pi).reshape(B, L, H, M)
    k_thetas = (jnp.tanh(lin(keys, layer.k_theta_w, layer.k_theta_b)) * math.pi).reshape(B, S, H, M)

    q = lin(queries, layer.q_w, layer.q_b).reshape(B, L, H, -1)
    k = lin(keys, layer.k_w, layer.k_b).reshape(B, S, H, -1)
    v = lin(values, layer.v_w, layer.v_b).reshape(B, S, H, -1)
    E = q.shape[-1]
    E2 = E // (2 * M)

    qi = jnp.arange(L, dtype=jnp.float32)
    ki = jnp.arange(S, dtype=jnp.float32)
    q_phase = q_omegas * qi[None, :, None, None] + q_thetas
    k_phase = k_omegas * ki[None, :, None, None] + k_thetas
    qp = q.reshape(B, L, H, M, E2, 2)
    kp = k.reshape(B, S, H, M, E2, 2)
    cq, sq = jnp.cos(q_phase)[..., None, None], jnp.sin(q_phase)[..., None, None]
    ck, sk = jnp.cos(k_phase)[..., None, None], jnp.sin(k_phase)[..., None, None]
    rq = jnp.stack([-qp[..., 1], qp[..., 0]], axis=-1)
    rk = jnp.stack([-kp[..., 1], kp[..., 0]], axis=-1)
    qrot = (qp * cq + rq * sq).reshape(B, L, H, E)
    krot = (kp * ck + rk * sk).reshape(B, S, H, E)

    scores = jnp.einsum("blhe,bshe->bhls", qrot, krot, precision=hp)
    A = jax.nn.softmax(scores / math.sqrt(E), axis=-1)
    V = jnp.einsum("bhls,bshd->blhd", A, v, precision=hp).reshape(B, L, -1)
    out = lin(V, layer.out_w, layer.out_b)

    q_diff = q_omegas[:, 1:] - q_omegas[:, :-1]
    k_diff = k_omegas[:, 1:] - k_omegas[:, :-1]
    omega_pen = jnp.sum(q_diff ** 2) + jnp.sum(k_diff ** 2)
    theta_pen = jnp.sum(q_thetas ** 2) + jnp.sum(k_thetas ** 2)
    return out, A, omega_pen, theta_pen


if __name__ == "__main__":
    B, L, S, d_model, n_heads, n_periods = 2, 8, 8, 32, 4, 2
    root = jax.random.PRNGKey(0)
    k_layer, k_q, k_k, k_v = jax.random.split(root, 4)

    layer = LearningToRotateAttentionLayerPallas(
        k_layer, query_size=L, key_size=S, d_model=d_model,
        n_heads=n_heads, period_type="variant", n_periods=n_periods,
        output_attention=True, use_bf16_mxu=True)

    queries = jax.random.normal(k_q, (B, L, d_model), jnp.float32)
    keys = jax.random.normal(k_k, (B, S, d_model), jnp.float32)
    values = jax.random.normal(k_v, (B, S, d_model), jnp.float32)

    out, attn, omega_pen, theta_pen = layer(queries, keys, values)
    jax.block_until_ready((out, attn, omega_pen, theta_pen))

    ref_out, ref_attn, ref_op, ref_tp = reference_forward(layer, queries, keys, values)
    assert out.shape == (B, L, d_model)
    assert attn.shape == (B, n_heads, L, S)
    assert jnp.allclose(out, ref_out, atol=5e-2, rtol=5e-2)
    assert jnp.allclose(attn, ref_attn, atol=2.5e-2, rtol=2.5e-2)
    assert jnp.allclose(omega_pen, ref_op, atol=1e-1, rtol=1e-1)
    assert jnp.allclose(theta_pen, ref_tp, atol=1e-1, rtol=1e-1)

    print("KERNEL_OK")
</pallas_src>

<mosaic_0001>
module attributes {stable_mosaic.version = 11 : i64} {
  func.func @_fused_proj_kernel(%arg0: i32, %arg1: memref<16x32xf32, #tpu.memory_space<vmem>>, %arg2: memref<32x32xf32, #tpu.memory_space<vmem>>, %arg3: memref<1x32xf32, #tpu.memory_space<vmem>>, %arg4: memref<32x8xf32, #tpu.memory_space<vmem>>, %arg5: memref<1x8xf32, #tpu.memory_space<vmem>>, %arg6: memref<32x8xf32, #tpu.memory_space<vmem>>, %arg7: memref<1x8xf32, #tpu.memory_space<vmem>>, %arg8: memref<16x32xf32, #tpu.memory_space<vmem>>, %arg9: memref<16x8xf32, #tpu.memory_space<vmem>>, %arg10: memref<16x8xf32, #tpu.memory_space<vmem>>) attributes {dimension_semantics = [#tpu.dimension_semantics<parallel>], iteration_bounds = array<i64: 1>, scalar_prefetch = 0 : i64, scratch_operands = 0 : i64, tpu.core_type = #tpu.core_type<tc>, window_params = [{transform_indices = @transform_0, window_bounds = array<i64: 16, 32>}, {pipeline_mode = #tpu.pipeline_mode<synchronous>, transform_indices = @transform_1, window_bounds = array<i64: 32, 32>}, {pipeline_mode = #tpu.pipeline_mode<synchronous>, transform_indices = @transform_2, window_bounds = array<i64: 1, 32>}, {pipeline_mode = #tpu.pipeline_mode<synchronous>, transform_indices = @transform_3, window_bounds = array<i64: 32, 8>}, {pipeline_mode = #tpu.pipeline_mode<synchronous>, transform_indices = @transform_4, window_bounds = array<i64: 1, 8>}, {pipeline_mode = #tpu.pipeline_mode<synchronous>, transform_indices = @transform_5, window_bounds = array<i64: 32, 8>}, {pipeline_mode = #tpu.pipeline_mode<synchronous>, transform_indices = @transform_6, window_bounds = array<i64: 1, 8>}, {transform_indices = @transform_7, window_bounds = array<i64: 16, 32>}, {transform_indices = @transform_8, window_bounds = array<i64: 16, 8>}, {transform_indices = @transform_9, window_bounds = array<i64: 16, 8>}]} {
    %c0 = arith.constant 0 : index
    %c0_0 = arith.constant 0 : index
    %0 = vector.load %arg1[%c0, %c0_0] : memref<16x32xf32, #tpu.memory_space<vmem>>, vector<16x32xf32>
    %c0_1 = arith.constant 0 : index
    %c0_2 = arith.constant 0 : index
    %1 = vector.load %arg2[%c0_1, %c0_2] : memref<32x32xf32, #tpu.memory_space<vmem>>, vector<32x32xf32>
    %cst = arith.constant dense<0.000000e+00> : vector<16x32xf32>
    %2 = tpu.matmul %0, %1, %cst {dimension_numbers = #tpu.dot_dimension_numbers<[1], [0], [0], [1], [0, 0, 1, 1], [], []>} : vector<16x32xf32>, vector<32x32xf32>, vector<16x32xf32> -> vector<16x32xf32>
    %c0_3 = arith.constant 0 : index
    %c0_4 = arith.constant 0 : index
    %3 = vector.load %arg3[%c0_3, %c0_4] : memref<1x32xf32, #tpu.memory_space<vmem>>, vector<1x32xf32>
    %4 = vector.broadcast %3 : vector<1x32xf32> to vector<16x32xf32>
    %5 = arith.addf %2, %4 : vector<16x32xf32>
    %c0_5 = arith.constant 0 : index
    %c0_6 = arith.constant 0 : index
    %6 = vector.load %arg8[%c0_5, %c0_6] : memref<16x32xf32, #tpu.memory_space<vmem>>, vector<16x32xf32>
    tpu.vector_store %arg8[%c0_5, %c0_6], %5 {strides = array<i32>} : memref<16x32xf32, #tpu.memory_space<vmem>>, vector<16x32xf32>,
    %c0_7 = arith.constant 0 : index
    %c0_8 = arith.constant 0 : index
    %7 = vector.load %arg4[%c0_7, %c0_8] : memref<32x8xf32, #tpu.memory_space<vmem>>, vector<32x8xf32>
    %cst_9 = arith.constant dense<0.000000e+00> : vector<16x8xf32>
    %8 = tpu.matmul %0, %7, %cst_9 {dimension_numbers = #tpu.dot_dimension_numbers<[1], [0], [0], [1], [0, 0, 1, 1], [], []>} : vector<16x32xf32>, vector<32x8xf32>, vector<16x8xf32> -> vector<16x8xf32>
    %c0_10 = arith.constant 0 : index
    %c0_11 = arith.constant 0 : index
    %9 = vector.load %arg5[%c0_10, %c0_11] : memref<1x8xf32, #tpu.memory_space<vmem>>, vector<1x8xf32>
    %10 = vector.broadcast %9 : vector<1x8xf32> to vector<16x8xf32>
    %11 = arith.addf %8, %10 : vector<16x8xf32>
    %cst_12 = arith.constant 0.000000e+00 : f32
    %12 = vector.broadcast %cst_12 : f32 to vector<16x8xf32>
    %13 = arith.maximumf %11, %12 : vector<16x8xf32>
    %c0_13 = arith.constant 0 : index
    %c0_14 = arith.constant 0 : index
    %14 = vector.load %arg9[%c0_13, %c0_14] : memref<16x8xf32, #tpu.memory_space<vmem>>, vector<16x8xf32>
    tpu.vector_store %arg9[%c0_13, %c0_14], %13 {strides = array<i32>} : memref<16x8xf32, #tpu.memory_space<vmem>>, vector<16x8xf32>,
    %c0_15 = arith.constant 0 : index
    %c0_16 = arith.constant 0 : index
    %15 = vector.load %arg6[%c0_15, %c0_16] : memref<32x8xf32, #tpu.memory_space<vmem>>, vector<32x8xf32>
    %cst_17 = arith.constant dense<0.000000e+00> : vector<16x8xf32>
    %16 = tpu.matmul %0, %15, %cst_17 {dimension_numbers = #tpu.dot_dimension_numbers<[1], [0], [0], [1], [0, 0, 1, 1], [], []>} : vector<16x32xf32>, vector<32x8xf32>, vector<16x8xf32> -> vector<16x8xf32>
    %c0_18 = arith.constant 0 : index
    %c0_19 = arith.constant 0 : index
    %17 = vector.load %arg7[%c0_18, %c0_19] : memref<1x8xf32, #tpu.memory_space<vmem>>, vector<1x8xf32>
    %18 = vector.broadcast %17 : vector<1x8xf32> to vector<16x8xf32>
    %19 = arith.addf %16, %18 : vector<16x8xf32>
    %20 = math.tanh %19 : vector<16x8xf32>
    %cst_20 = arith.constant 3.14159274 : f32
    %21 = vector.broadcast %cst_20 : f32 to vector<16x8xf32>
    %22 = arith.mulf %20, %21 : vector<16x8xf32>
    %c0_21 = arith.constant 0 : index
    %c0_22 = arith.constant 0 : index
    %23 = vector.load %arg10[%c0_21, %c0_22] : memref<16x8xf32, #tpu.memory_space<vmem>>, vector<16x8xf32>
    tpu.vector_store %arg10[%c0_21, %c0_22], %22 {strides = array<i32>} : memref<16x8xf32, #tpu.memory_space<vmem>>, vector<16x8xf32>,
    return
  }
  func.func @transform_0(%arg0: i32) -> (i32, i32) {
    %c0_i32 = arith.constant 0 : i32
    %c0_i32_0 = arith.constant 0 : i32
    return %arg0, %c0_i32 : i32, i32
  }
  func.func @transform_1(%arg0: i32) -> (i32, i32) {
    %c0_i32 = arith.constant 0 : i32
    %c0_i32_0 = arith.constant 0 : i32
    %c0_i32_1 = arith.constant 0 : i32
    return %c0_i32, %c0_i32_0 : i32, i32
  }
  func.func @transform_2(%arg0: i32) -> (i32, i32) {
    %c0_i32 = arith.constant 0 : i32
    %c0_i32_0 = arith.constant 0 : i32
    %c0_i32_1 = arith.constant 0 : i32
    return %c0_i32, %c0_i32_0 : i32, i32
  }
  func.func @transform_3(%arg0: i32) -> (i32, i32) {
    %c0_i32 = arith.constant 0 : i32
    %c0_i32_0 = arith.constant 0 : i32
    %c0_i32_1 = arith.constant 0 : i32
    return %c0_i32, %c0_i32_0 : i32, i32
  }
  func.func @transform_4(%arg0: i32) -> (i32, i32) {
    %c0_i32 = arith.constant 0 : i32
    %c0_i32_0 = arith.constant 0 : i32
    %c0_i32_1 = arith.constant 0 : i32
    return %c0_i32, %c0_i32_0 : i32, i32
  }
  func.func @transform_5(%arg0: i32) -> (i32, i32) {
    %c0_i32 = arith.constant 0 : i32
    %c0_i32_0 = arith.constant 0 : i32
    %c0_i32_1 = arith.constant 0 : i32
    return %c0_i32, %c0_i32_0 : i32, i32
  }
  func.func @transform_6(%arg0: i32) -> (i32, i32) {
    %c0_i32 = arith.constant 0 : i32
    %c0_i32_0 = arith.constant 0 : i32
    %c0_i32_1 = arith.constant 0 : i32
    return %c0_i32, %c0_i32_0 : i32, i32
  }
  func.func @transform_7(%arg0: i32) -> (i32, i32) {
    %c0_i32 = arith.constant 0 : i32
    %c0_i32_0 = arith.constant 0 : i32
    return %arg0, %c0_i32 : i32, i32
  }
  func.func @transform_8(%arg0: i32) -> (i32, i32) {
    %c0_i32 = arith.constant 0 : i32
    %c0_i32_0 = arith.constant 0 : i32
    return %arg0, %c0_i32 : i32, i32
  }
  func.func @transform_9(%arg0: i32) -> (i32, i32) {
    %c0_i32 = arith.constant 0 : i32
    %c0_i32_0 = arith.constant 0 : i32
    return %arg0, %c0_i32 : i32, i32
  }
}

</mosaic_0001>

<llo_original>
// kernel: tpu_custom_call.1
$region0: #{tpu_custom_call.1}
  #allocation0 [shape = 'u32[]', space=smem, size = 0x4, offset = 0x4, fixed_abs, tag = 'smem constant byte address 0x4 - core index']
  #allocation1 [shape = 'u32[144,128]{1,0:T(1,128)}', space=vmem, size = 0x12000, scoped, tag = 'internal scratch']
  %s0 = inlined_call_operand.vmem [shape: f32[16,32], index: 0, kind: input, shape index: {}]
  %s1 = inlined_call_operand.vmem [shape: f32[32,32], index: 1, kind: input, shape index: {}]
  %s2 = inlined_call_operand.vmem [shape: f32[1,32], index: 2, kind: input, shape index: {}]
  %s3 = inlined_call_operand.vmem [shape: f32[32,8], index: 3, kind: input, shape index: {}]
  %s4 = inlined_call_operand.vmem [shape: f32[1,8], index: 4, kind: input, shape index: {}]
  %s5 = inlined_call_operand.vmem [shape: f32[32,8], index: 5, kind: input, shape index: {}]
  %s6 = inlined_call_operand.vmem [shape: f32[1,8], index: 6, kind: input, shape index: {}]
  %s7 = inlined_call_operand.hbm [shape: f32[16,32], index: 7, kind: output, shape index: {0}]
  %s8 = inlined_call_operand.vmem [shape: f32[16,8], index: 8, kind: output, shape index: {1}]
  %s9 = inlined_call_operand.vmem [shape: f32[16,8], index: 9, kind: output, shape index: {2}]
  %10 = xla_tuple %s7, %s8, %s9
  %s11 = sld [smem:[#allocation0]]
  $region54: #{tpu_custom_call.1} parent=0
    _
  %s13 = ssub.s32 1, %s11
  %s14 = scalar_select 0, %s13, %s11
  $region1: #{tpu_custom_call.1} parent=0
    #allocation2 [shape = 'u8[8192]{0}', space=vmem, size = 0x2000, scoped, tag = 'output window, operand 0, single buffered']
    #allocation3 [shape = 's32[1]{0}', space=sflag, size = 0x4, scoped, tag = 'scoped memory for tpu_custom_call.1']
    %15 = vsyncpa [#allocation3], 0
    // Predicated region
    $region2: #{tpu_custom_call.1} parent=1 // pred_check
      _
    $region3: #{tpu_custom_call.1} parent=1 // pred_check_branch
      %17 = sbr.rel (0) target = $region5
    $region4: #{tpu_custom_call.1} parent=1 // pred_region
      _
    $region5: #{tpu_custom_call.1} parent=1 // pred_fallthru
      _
    // Predicated region
    $region6: #{tpu_custom_call.1} parent=1 // pred_check
      _
    $region7: #{tpu_custom_call.1} parent=1 // pred_check_branch
      %19 = sbr.rel (0) target = $region9
    $region8: #{tpu_custom_call.1} parent=1 // pred_region
      _
    $region9: #{tpu_custom_call.1} parent=1 // pred_fallthru
      _
    // Predicated region
    $region10: #{tpu_custom_call.1} parent=1 // pred_check
      _
    $region11: #{tpu_custom_call.1} parent=1 // pred_check_branch
      %21 = sbr.rel (0) target = $region13
    $region12: #{tpu_custom_call.1} parent=1 // pred_region
      _
    $region13: #{tpu_custom_call.1} parent=1 // pred_fallthru
      _
    // Predicated region
    $region14: #{tpu_custom_call.1} parent=1 // pred_check
      _
    $region15: #{tpu_custom_call.1} parent=1 // pred_check_branch
      %23 = sbr.rel (0) target = $region17
    $region16: #{tpu_custom_call.1} parent=1 // pred_region
      _
    $region17: #{tpu_custom_call.1} parent=1 // pred_fallthru
      _
    // Predicated region
    $region18: #{tpu_custom_call.1} parent=1 // pred_check
      _
    $region19: #{tpu_custom_call.1} parent=1 // pred_check_branch
      %25 = sbr.rel (0) target = $region21
    $region20: #{tpu_custom_call.1} parent=1 // pred_region
      _
    $region21: #{tpu_custom_call.1} parent=1 // pred_fallthru
      _
    // Predicated region
    $region22: #{tpu_custom_call.1} parent=1 // pred_check
      _
    $region23: #{tpu_custom_call.1} parent=1 // pred_check_branch
      %27 = sbr.rel (0) target = $region25
    $region24: #{tpu_custom_call.1} parent=1 // pred_region
      _
    $region25: #{tpu_custom_call.1} parent=1 // pred_fallthru
      _
    // Predicated region
    $region26: #{tpu_custom_call.1} parent=1 // pred_check
      _
    $region27: #{tpu_custom_call.1} parent=1 // pred_check_branch
      %29 = sbr.rel (0) target = $region29
    $region28: #{tpu_custom_call.1} parent=1 // pred_region
      _
    $region29: #{tpu_custom_call.1} parent=1 // pred_fallthru
      _
    %v30 = vld [vmem:[%s0] sm:$0xff]
    %v31 = vld [vmem:[%s0 + $0x8] sm:$0xff]
    %v32 = vld [vmem:[%s1] sm:$0xff]
    %v33 = vld [vmem:[%s1 + $0x8] sm:$0xff]
    %v34 = vld [vmem:[%s1 + $0x10] sm:$0xff]
    %v35 = vld [vmem:[%s1 + $0x18] sm:$0xff]
    %v36 = vld [vmem:[%s2] sm:$0x1]
    %v38 = vlaneseq
    %v39 = vshrl.u32 %v38, 7
    %v40 = vsub.s32 0, %v39
    %v41 = vrot.slane %v36, %v40
    %vm43 = vcmask 261120
    %v45 = vsel %vm43, %v30, 0
    %v48 = vsel %vm43, %v31, 0
    %50 = vmatprep.subr.mxu0 0.0
    %51 = vmatpush1.msra.mxu0 %v32
    %52 = vmatprep.subr.mxu0 0.0
    %53 = vmatpush1.msra.mxu0 %v33
    %54 = vmatprep.subr.mxu0 0.0
    %55 = vmatpush1.msra.mxu0 %v34
    %56 = vmatprep.subr.mxu0 0.0
    %57 = vmatpush1.msra.mxu0 %v35
    %58 = vmatprep.subr.mxu0 0.0
    %59 = vmatpush1.msra.mxu0 0.0
    %60 = vmatprep.subr.mxu0 0.0
    %61 = vmatpush1.msra.mxu0 0.0
    %62 = vmatprep.subr.mxu0 0.0
    %63 = vmatpush1.msra.mxu0 0.0
    %64 = vmatprep.subr.mxu0 0.0
    %65 = vmatpush1.msra.mxu0 0.0
    %66 = vmatprep.subr.mxu0 0.0
    %67 = vmatpush1.msra.mxu0 0.0
    %68 = vmatprep.subr.mxu0 0.0
    %69 = vmatpush1.msra.mxu0 0.0
    %70 = vmatprep.subr.mxu0 0.0
    %71 = vmatpush1.msra.mxu0 0.0
    %72 = vmatprep.subr.mxu0 0.0
    %73 = vmatpush1.msra.mxu0 0.0
    %74 = vmatprep.subr.mxu0 0.0
    %75 = vmatpush1.msra.mxu0 0.0
    %76 = vmatprep.subr.mxu0 0.0
    %77 = vmatpush1.msra.mxu0 0.0
    %78 = vmatprep.subr.mxu0 0.0
    %79 = vmatpush1.msra.mxu0 0.0
    %80 = vmatprep.subr.mxu0 0.0
    %81 = vmatpush1.msra.mxu0 0.0
    %82 = vmatprep.subr.mxu0 0.0
    %83 = vmatpush1.msra.mxu0 0.0
    %84 = vmatprep.subr.mxu0 0.0
    %85 = vmatpush1.msra.mxu0 0.0
    %86 = vmatprep.subr.mxu0 0.0
    %87 = vmatpush1.msra.mxu0 0.0
    %88 = vmatprep.subr.mxu0 0.0
    %89 = vmatpush1.msra.mxu0 0.0
    %90 = vmatprep.subr.mxu0 0.0
    %91 = vmatpush1.msra.mxu0 0.0
    %92 = vmatprep.subr.mxu0 0.0
    %93 = vmatpush1.msra.mxu0 0.0
    %94 = vmatprep.subr.mxu0 0.0
    %95 = vmatpush1.msra.mxu0 0.0
    %96 = vmatprep.subr.mxu0 0.0
    %97 = vmatpush1.msra.mxu0 0.0
    %98 = vmatprep.subr.mxu0 0.0
    %99 = vmatpush1.msra.mxu0 0.0
    %100 = vmatprep.subr.mxu0 0.0
    %101 = vmatpush1.msra.mxu0 0.0
    %102 = vmatprep.subr.mxu0 0.0
    %103 = vmatpush1.msra.mxu0 0.0
    %104 = vmatprep.subr.mxu0 0.0
    %105 = vmatpush1.msra.mxu0 0.0
    %106 = vmatprep.subr.mxu0 0.0
    %107 = vmatpush1.msra.mxu0 0.0
    %108 = vmatprep.subr.mxu0 0.0
    %109 = vmatpush1.msra.mxu0 0.0
    %110 = vmatprep.subr.mxu0 0.0
    %111 = vmatpush1.msra.mxu0 0.0
    %112 = vmatprep.subr.mxu0 0.0
    %113 = vmatpush1.msra.mxu0 0.0
    %114 = vmatprep.mubr.f32.mxu0 0.0
    %115 = vmatmul.mubr.f32.gmra.mrb[0].mxu0 %v45
    %v116 = vpop.f32.mrb[0].mxu0
    %v117 = vadd.f32 %v41, %v116
    %v118 = vpop.f32.mrb[0].mxu0
    %119 = vmatprep.mubr.f32.mxu0 0.0
    %120 = vmatmul.mubr.f32.gmra.mrb[0].mxu0 %v48
    %v121 = vpop.f32.mrb[0].mxu0
    %v122 = vadd.f32 %v41, %v121
    %v123 = vpop.f32.mrb[0].mxu0
    %124 = vdwg.mxu0
    %125 = vst.msk [vmem:[#allocation2] sm:$0xff] %vm43, %v117
    %126 = vst.msk [vmem:[#allocation2 + $0x8] sm:$0xff] %vm43, %v122
    %v127 = vld [vmem:[%s3] sm:$0xff]
    %v128 = vld [vmem:[%s3 + $0x8] sm:$0xff]
    %v129 = vld [vmem:[%s3 + $0x10] sm:$0xff]
    %v130 = vld [vmem:[%s3 + $0x18] sm:$0xff]
    %v131 = vld [vmem:[%s4] sm:$0x1]
    %v133 = vlaneseq
    %v134 = vshrl.u32 %v133, 7
    %v135 = vsub.s32 0, %v134
    %v136 = vrot.slane %v131, %v135
    %138 = vmatprep.subr.mxu0 0.0
    %139 = vmatpush1.msra.mxu0 %v127
    %140 = vmatprep.subr.mxu0 0.0
    %141 = vmatpush1.msra.mxu0 %v128
    %142 = vmatprep.subr.mxu0 0.0
    %143 = vmatpush1.msra.mxu0 %v129
    %144 = vmatprep.subr.mxu0 0.0
    %145 = vmatpush1.msra.mxu0 %v130
    %146 = vmatprep.subr.mxu0 0.0
    %147 = vmatpush1.msra.mxu0 0.0
    %148 = vmatprep.subr.mxu0 0.0
    %149 = vmatpush1.msra.mxu0 0.0
    %150 = vmatprep.subr.mxu0 0.0
    %151 = vmatpush1.msra.mxu0 0.0
    %152 = vmatprep.subr.mxu0 0.0
    %153 = vmatpush1.msra.mxu0 0.0
    %154 = vmatprep.subr.mxu0 0.0
    %155 = vmatpush1.msra.mxu0 0.0
    %156 = vmatprep.subr.mxu0 0.0
    %157 = vmatpush1.msra.mxu0 0.0
    %158 = vmatprep.subr.mxu0 0.0
    %159 = vmatpush1.msra.mxu0 0.0
    %160 = vmatprep.subr.mxu0 0.0
    %161 = vmatpush1.msra.mxu0 0.0
    %162 = vmatprep.subr.mxu0 0.0
    %163 = vmatpush1.msra.mxu0 0.0
    %164 = vmatprep.subr.mxu0 0.0
    %165 = vmatpush1.msra.mxu0 0.0
    %166 = vmatprep.subr.mxu0 0.0
    %167 = vmatpush1.msra.mxu0 0.0
    %168 = vmatprep.subr.mxu0 0.0
    %169 = vmatpush1.msra.mxu0 0.0
    %170 = vmatprep.subr.mxu0 0.0
    %171 = vmatpush1.msra.mxu0 0.0
    %172 = vmatprep.subr.mxu0 0.0
    %173 = vmatpush1.msra.mxu0 0.0
    %174 = vmatprep.subr.mxu0 0.0
    %175 = vmatpush1.msra.mxu0 0.0
    %176 = vmatprep.subr.mxu0 0.0
    %177 = vmatpush1.msra.mxu0 0.0
    %178 = vmatprep.subr.mxu0 0.0
    %179 = vmatpush1.msra.mxu0 0.0
    %180 = vmatprep.subr.mxu0 0.0
    %181 = vmatpush1.msra.mxu0 0.0
    %182 = vmatprep.subr.mxu0 0.0
    %183 = vmatpush1.msra.mxu0 0.0
    %184 = vmatprep.subr.mxu0 0.0
    %185 = vmatpush1.msra.mxu0 0.0
    %186 = vmatprep.subr.mxu0 0.0
    %187 = vmatpush1.msra.mxu0 0.0
    %188 = vmatprep.subr.mxu0 0.0
    %189 = vmatpush1.msra.mxu0 0.0
    %190 = vmatprep.subr.mxu0 0.0
    %191 = vmatpush1.msra.mxu0 0.0
    %192 = vmatprep.subr.mxu0 0.0
    %193 = vmatpush1.msra.mxu0 0.0
    %194 = vmatprep.subr.mxu0 0.0
    %195 = vmatpush1.msra.mxu0 0.0
    %196 = vmatprep.subr.mxu0 0.0
    %197 = vmatpush1.msra.mxu0 0.0
    %198 = vmatprep.subr.mxu0 0.0
    %199 = vmatpush1.msra.mxu0 0.0
    %200 = vmatprep.subr.mxu0 0.0
    %201 = vmatpush1.msra.mxu0 0.0
    %202 = vmatprep.mubr.f32.mxu0 0.0
    %203 = vmatmul.mubr.f32.gmra.mrb[0].mxu0 %v45
    %v204 = vpop.f32.mrb[0].mxu0
    %v205 = vadd.f32 %v136, %v204
    %v206 = vpop.f32.mrb[0].mxu0
    %207 = vmatprep.mubr.f32.mxu0 0.0
    %208 = vmatmul.mubr.f32.gmra.mrb[0].mxu0 %v48
    %v209 = vpop.f32.mrb[0].mxu0
    %v210 = vadd.f32 %v136, %v209
    %v211 = vpop.f32.mrb[0].mxu0
    %212 = vdwg.mxu0
    %v213 = vmax.f32 %v205, 0.0
    %v214 = vmax.f32 %v210, 0.0
    %vm215 = vcmask 64512
    %216 = vst.msk [vmem:[%s8] sm:$0xff] %vm215, %v213
    %217 = vst.msk [vmem:[%s8 + $0x8] sm:$0xff] %vm215, %v214
    %v218 = vld [vmem:[%s5] sm:$0xff]
    %v219 = vld [vmem:[%s5 + $0x8] sm:$0xff]
    %v220 = vld [vmem:[%s5 + $0x10] sm:$0xff]
    %v221 = vld [vmem:[%s5 + $0x18] sm:$0xff]
    %v222 = vld [vmem:[%s6] sm:$0x1]
    %v224 = vlaneseq
    %v225 = vshrl.u32 %v224, 7
    %v226 = vsub.s32 0, %v225
    %v227 = vrot.slane %v222, %v226
    %229 = vmatprep.subr.mxu0 0.0
    %230 = vmatpush1.msra.mxu0 %v218
    %231 = vmatprep.subr.mxu0 0.0
    %232 = vmatpush1.msra.mxu0 %v219
    %233 = vmatprep.subr.mxu0 0.0
    %234 = vmatpush1.msra.mxu0 %v220
    %235 = vmatprep.subr.mxu0 0.0
    %236 = vmatpush1.msra.mxu0 %v221
    %237 = vmatprep.subr.mxu0 0.0
    %238 = vmatpush1.msra.mxu0 0.0
    %239 = vmatprep.subr.mxu0 0.0
    %240 = vmatpush1.msra.mxu0 0.0
    %241 = vmatprep.subr.mxu0 0.0
    %242 = vmatpush1.msra.mxu0 0.0
    %243 = vmatprep.subr.mxu0 0.0
    %244 = vmatpush1.msra.mxu0 0.0
    %245 = vmatprep.subr.mxu0 0.0
    %246 = vmatpush1.msra.mxu0 0.0
    %247 = vmatprep.subr.mxu0 0.0
    %248 = vmatpush1.msra.mxu0 0.0
    %249 = vmatprep.subr.mxu0 0.0
    %250 = vmatpush1.msra.mxu0 0.0
    %251 = vmatprep.subr.mxu0 0.0
    %252 = vmatpush1.msra.mxu0 0.0
    %253 = vmatprep.subr.mxu0 0.0
    %254 = vmatpush1.msra.mxu0 0.0
    %255 = vmatprep.subr.mxu0 0.0
    %256 = vmatpush1.msra.mxu0 0.0
    %257 = vmatprep.subr.mxu0 0.0
    %258 = vmatpush1.msra.mxu0 0.0
    %259 = vmatprep.subr.mxu0 0.0
    %260 = vmatpush1.msra.mxu0 0.0
    %261 = vmatprep.subr.mxu0 0.0
    %262 = vmatpush1.msra.mxu0 0.0
    %263 = vmatprep.subr.mxu0 0.0
    %264 = vmatpush1.msra.mxu0 0.0
    %265 = vmatprep.subr.mxu0 0.0
    %266 = vmatpush1.msra.mxu0 0.0
    %267 = vmatprep.subr.mxu0 0.0
    %268 = vmatpush1.msra.mxu0 0.0
    %269 = vmatprep.subr.mxu0 0.0
    %270 = vmatpush1.msra.mxu0 0.0
    %271 = vmatprep.subr.mxu0 0.0
    %272 = vmatpush1.msra.mxu0 0.0
    %273 = vmatprep.subr.mxu0 0.0
    %274 = vmatpush1.msra.mxu0 0.0
    %275 = vmatprep.subr.mxu0 0.0
    %276 = vmatpush1.msra.mxu0 0.0
    %277 = vmatprep.subr.mxu0 0.0
    %278 = vmatpush1.msra.mxu0 0.0
    %279 = vmatprep.subr.mxu0 0.0
    %280 = vmatpush1.msra.mxu0 0.0
    %281 = vmatprep.subr.mxu0 0.0
    %282 = vmatpush1.msra.mxu0 0.0
    %283 = vmatprep.subr.mxu0 0.0
    %284 = vmatpush1.msra.mxu0 0.0
    %285 = vmatprep.subr.mxu0 0.0
    %286 = vmatpush1.msra.mxu0 0.0
    %287 = vmatprep.subr.mxu0 0.0
    %288 = vmatpush1.msra.mxu0 0.0
    %289 = vmatprep.subr.mxu0 0.0
    %290 = vmatpush1.msra.mxu0 0.0
    %291 = vmatprep.subr.mxu0 0.0
    %292 = vmatpush1.msra.mxu0 0.0
    %293 = vmatprep.mubr.f32.mxu0 0.0
    %294 = vmatmul.mubr.f32.gmra.mrb[0].mxu0 %v45
    %v295 = vpop.f32.mrb[0].mxu0
    %v296 = vadd.f32 %v227, %v295
    %v297 = vpop.f32.mrb[0].mxu0
    %298 = vmatprep.mubr.f32.mxu0 0.0
    %299 = vmatmul.mubr.f32.gmra.mrb[0].mxu0 %v48
    %v300 = vpop.f32.mrb[0].mxu0
    %v301 = vadd.f32 %v227, %v300
    %v302 = vpop.f32.mrb[0].mxu0
    %303 = vdwg.mxu0
    %v304 = vtanh.pop %v296
    %v305 = vtanh.pop %v301
    %v306 = vmul.f32 %v304, 3.1415927
    %v307 = vmul.f32 %v305, 3.1415927
    %308 = vst.msk [vmem:[%s9] sm:$0xff] %vm215, %v306
    %309 = vst.msk [vmem:[%s9 + $0x8] sm:$0xff] %vm215, %v307
    // Predicated region
    $region30: #{tpu_custom_call.1} parent=1 // pred_check
      _
    $region31: #{tpu_custom_call.1} parent=1 // pred_check_branch
      %311 = sbr.rel (0) target = $region33
    $region32: #{tpu_custom_call.1} parent=1 // pred_region
      %s313 = ssub.s32 256, 256
      %314 = vsyncadd [#allocation3], %s313
      %s315 = sshll.u32 [#allocation2], 4
      %s316 = int_to_ptr.vmem [resolvable:$true] %s315
      %321 = dma.vmem_to_hbm [thread:$0]  %s316, 256, %s7, [#allocation3], 128, 128, 8
    $region33: #{tpu_custom_call.1} parent=1 // pred_fallthru
      _
    // Predicated region
    $region34: #{tpu_custom_call.1} parent=1 // pred_check
      _
    $region35: #{tpu_custom_call.1} parent=1 // pred_check_branch
      %323 = sbr.rel (0) target = $region37
    $region36: #{tpu_custom_call.1} parent=1 // pred_region
      _
    $region37: #{tpu_custom_call.1} parent=1 // pred_fallthru
      _
    // Predicated region
    $region38: #{tpu_custom_call.1} parent=1 // pred_check
      _
    $region39: #{tpu_custom_call.1} parent=1 // pred_check_branch
      %325 = sbr.rel (0) target = $region41
    $region40: #{tpu_custom_call.1} parent=1 // pred_region
      _
    $region41: #{tpu_custom_call.1} parent=1 // pred_fallthru
      _
    // Predicated region
    $region42: #{tpu_custom_call.1} parent=1 // pred_check
      _
    $region43: #{tpu_custom_call.1} parent=1 // pred_check_branch
      %327 = sbr.rel (0) target = $region45
    $region44: #{tpu_custom_call.1} parent=1 // pred_region
      %328 = dma.done [#allocation3], 256
    $region45: #{tpu_custom_call.1} parent=1 // pred_fallthru
      _
    // Predicated region
    $region46: #{tpu_custom_call.1} parent=1 // pred_check
      _
    $region47: #{tpu_custom_call.1} parent=1 // pred_check_branch
      %330 = sbr.rel (0) target = $region49
    $region48: #{tpu_custom_call.1} parent=1 // pred_region
      _
    $region49: #{tpu_custom_call.1} parent=1 // pred_fallthru
      _
    // Predicated region
    $region50: #{tpu_custom_call.1} parent=1 // pred_check
      _
    $region51: #{tpu_custom_call.1} parent=1 // pred_check_branch
      %332 = sbr.rel (0) target = $region53
    $region52: #{tpu_custom_call.1} parent=1 // pred_region
      _
    $region53: #{tpu_custom_call.1} parent=1 // pred_fallthru
      _
    %333 = vsyncpa [#allocation3], 1

</llo_original>
